<compile_context>
chip_gen: v7x
topology: tpu7x:2x2x1
jax: 0.10.0
libtpu: 0.0.40
codegen_flags: <defaults>
</compile_context>

<pallas_src>
import jax
import jax.numpy as jnp
from jax.experimental import pallas as pl
from jax.experimental.pallas import tpu as pltpu


def actor_kernel(x_ref, w1_ref, b1_ref, w2_ref, b2_ref, w3_ref, b3_ref, o_ref):
    # x tile: (nb_obs, tile_b) -- batch on lanes.
    x = x_ref[...]
    # Layer 1: (nb_neurons, nb_obs) @ (nb_obs, tile_b) + b1, ReLU.
    h1 = jnp.dot(w1_ref[...], x, preferred_element_type=jnp.float32)
    h1 = jnp.maximum(h1 + b1_ref[...], 0.0)
    # Layer 2: (nb_neurons, nb_neurons) @ (nb_neurons, tile_b) + b2, ReLU.
    h2 = jnp.dot(w2_ref[...], h1, preferred_element_type=jnp.float32)
    h2 = jnp.maximum(h2 + b2_ref[...], 0.0)
    # Layer 3: (nb_actions, nb_neurons) @ (nb_neurons, tile_b) + b3.
    logits = jnp.dot(w3_ref[...], h2, preferred_element_type=jnp.float32)
    logits = logits + b3_ref[...]
    # Numerically-stable softmax over the action (sublane) axis, per sample.
    m = jnp.max(logits, axis=0, keepdims=True)
    e = jnp.exp(logits - m)
    s = jnp.sum(e, axis=0, keepdims=True)
    o_ref[...] = (e / s).astype(o_ref.dtype)


def network_actor_forward(x, params, *, tile_b=None):
    """x: (B, nb_obs) float32.

    params: PyTorch-layout weights (out, in) and biases (out, 1).
    Returns softmax action probabilities of shape (B, nb_actions).
    """
    B, nb_obs = x.shape
    nb_neurons = params["w1"].shape[0]
    nb_actions = params["w3"].shape[0]

    # Lane-aligned batch tiles: multiple of 128, capped at 512 so realistic PPO
    # batches still produce several parallel grid steps.
    if tile_b is None:
        tile_b = min(512, 128 * pl.cdiv(B, 128))
    assert tile_b % 128 == 0, "tile_b must be a multiple of 128 (lane width)"

    b_padded = tile_b * pl.cdiv(B, tile_b)
    xt = x.T  # (nb_obs, B): batch on the lane axis.
    if b_padded != B:
        xt = jnp.pad(xt, ((0, 0), (0, b_padded - B)))

    grid = (b_padded // tile_b,)
    bcast = lambda i: (0, 0)  # weights/biases: same (only) block every tile

    out_t = pl.pallas_call(
        actor_kernel,
        out_shape=jax.ShapeDtypeStruct((nb_actions, b_padded), jnp.float32),
        grid_spec=pltpu.PrefetchScalarGridSpec(
            num_scalar_prefetch=0,
            grid=grid,
            in_specs=[
                pl.BlockSpec((nb_obs, tile_b), lambda i: (0, i)),   # x^T tile
                pl.BlockSpec((nb_neurons, nb_obs), bcast),          # w1
                pl.BlockSpec((nb_neurons, 1), bcast),               # b1
                pl.BlockSpec((nb_neurons, nb_neurons), bcast),      # w2
                pl.BlockSpec((nb_neurons, 1), bcast),               # b2
                pl.BlockSpec((nb_actions, nb_neurons), bcast),      # w3
                pl.BlockSpec((nb_actions, 1), bcast),               # b3
            ],
            out_specs=pl.BlockSpec((nb_actions, tile_b), lambda i: (0, i)),
        ),
        compiler_params=pltpu.CompilerParams(
            dimension_semantics=("parallel",),
        ),
    )(xt, params["w1"], params["b1"], params["w2"], params["b2"],
      params["w3"], params["b3"])

    # Drop batch padding, return (B, nb_actions).
    return out_t[:, :B].T


def init_params(key, nb_obs, nb_neurons, nb_actions):
    """Deterministic init mirroring PyTorch Linear's U(-1/sqrt(fan_in), ...).
    Weights kept in PyTorch's native (out, in) layout; biases as (out, 1)."""
    ks = jax.random.split(key, 6)

    def linear(kw, kb, fan_in, fan_out):
        bound = 1.0 / jnp.sqrt(jnp.float32(fan_in))
        w = jax.random.uniform(kw, (fan_out, fan_in), jnp.float32, -bound, bound)
        b = jax.random.uniform(kb, (fan_out, 1), jnp.float32, -bound, bound)
        return w, b

    w1, b1 = linear(ks[0], ks[1], nb_obs, nb_neurons)
    w2, b2 = linear(ks[2], ks[3], nb_neurons, nb_neurons)
    w3, b3 = linear(ks[4], ks[5], nb_neurons, nb_actions)
    return {"w1": w1, "b1": b1, "w2": w2, "b2": b2, "w3": w3, "b3": b3}


def reference_forward(x, p):
    hi = jax.lax.Precision.HIGHEST
    h1 = jnp.maximum(jnp.dot(x, p["w1"].T, precision=hi) + p["b1"].T, 0.0)
    h2 = jnp.maximum(jnp.dot(h1, p["w2"].T, precision=hi) + p["b2"].T, 0.0)
    logits = jnp.dot(h2, p["w3"].T, precision=hi) + p["b3"].T
    return jax.nn.softmax(logits, axis=-1)


if __name__ == "__main__":
    nb_obs, nb_actions, nb_neurons = 16, 4, 32
    batch = 200  # deliberately not a multiple of the tile: exercises padding

    key = jax.random.PRNGKey(0)
    k_x, k_p = jax.random.split(key)
    x = jax.random.normal(k_x, (batch, nb_obs), jnp.float32)
    params = init_params(k_p, nb_obs, nb_neurons, nb_actions)

    out = network_actor_forward(x, params, tile_b=128)  # 2 grid steps + padding
    out = jax.block_until_ready(out)

    ref = reference_forward(x, params)
    assert out.shape == (batch, nb_actions)
    assert bool(jnp.allclose(jnp.sum(out, axis=-1), 1.0, atol=1e-5)), "rows must sum to 1"
    assert bool(jnp.allclose(out, ref, atol=1e-5, rtol=1e-4)), "mismatch vs reference"

    # Also check the default (larger) tile path.
    out2 = jax.block_until_ready(network_actor_forward(x, params))
    assert bool(jnp.allclose(out2, ref, atol=1e-5, rtol=1e-4)), "mismatch (default tile)"

    print("KERNEL_OK")
</pallas_src>

<mosaic_0001>
module attributes {stable_mosaic.version = 11 : i64} {
  func.func @actor_kernel(%arg0: i32, %arg1: memref<16x128xf32, #tpu.memory_space<vmem>>, %arg2: memref<32x16xf32, #tpu.memory_space<vmem>>, %arg3: memref<32x1xf32, #tpu.memory_space<vmem>>, %arg4: memref<32x32xf32, #tpu.memory_space<vmem>>, %arg5: memref<32x1xf32, #tpu.memory_space<vmem>>, %arg6: memref<4x32xf32, #tpu.memory_space<vmem>>, %arg7: memref<4x1xf32, #tpu.memory_space<vmem>>, %arg8: memref<4x128xf32, #tpu.memory_space<vmem>>) attributes {dimension_semantics = [#tpu.dimension_semantics<parallel>], iteration_bounds = array<i64: 2>, scalar_prefetch = 0 : i64, scratch_operands = 0 : i64, tpu.core_type = #tpu.core_type<tc>, window_params = [{transform_indices = @transform_0, window_bounds = array<i64: 16, 128>}, {pipeline_mode = #tpu.pipeline_mode<synchronous>, transform_indices = @transform_1, window_bounds = array<i64: 32, 16>}, {pipeline_mode = #tpu.pipeline_mode<synchronous>, transform_indices = @transform_2, window_bounds = array<i64: 32, 1>}, {pipeline_mode = #tpu.pipeline_mode<synchronous>, transform_indices = @transform_3, window_bounds = array<i64: 32, 32>}, {pipeline_mode = #tpu.pipeline_mode<synchronous>, transform_indices = @transform_4, window_bounds = array<i64: 32, 1>}, {pipeline_mode = #tpu.pipeline_mode<synchronous>, transform_indices = @transform_5, window_bounds = array<i64: 4, 32>}, {pipeline_mode = #tpu.pipeline_mode<synchronous>, transform_indices = @transform_6, window_bounds = array<i64: 4, 1>}, {transform_indices = @transform_7, window_bounds = array<i64: 4, 128>}]} {
    %c0 = arith.constant 0 : index
    %c0_0 = arith.constant 0 : index
    %0 = vector.load %arg1[%c0, %c0_0] : memref<16x128xf32, #tpu.memory_space<vmem>>, vector<16x128xf32>
    %c0_1 = arith.constant 0 : index
    %c0_2 = arith.constant 0 : index
    %1 = vector.load %arg2[%c0_1, %c0_2] : memref<32x16xf32, #tpu.memory_space<vmem>>, vector<32x16xf32>
    %cst = arith.constant dense<0.000000e+00> : vector<32x128xf32>
    %2 = tpu.matmul %1, %0, %cst {dimension_numbers = #tpu.dot_dimension_numbers<[1], [0], [0], [1], [0, 0, 1, 1], [], []>} : vector<32x16xf32>, vector<16x128xf32>, vector<32x128xf32> -> vector<32x128xf32>
    %c0_3 = arith.constant 0 : index
    %c0_4 = arith.constant 0 : index
    %3 = vector.load %arg3[%c0_3, %c0_4] : memref<32x1xf32, #tpu.memory_space<vmem>>, vector<32x1xf32>
    %4 = vector.broadcast %3 : vector<32x1xf32> to vector<32x128xf32>
    %5 = arith.addf %2, %4 : vector<32x128xf32>
    %cst_5 = arith.constant 0.000000e+00 : f32
    %6 = vector.broadcast %cst_5 : f32 to vector<32x128xf32>
    %7 = arith.maximumf %5, %6 : vector<32x128xf32>
    %c0_6 = arith.constant 0 : index
    %c0_7 = arith.constant 0 : index
    %8 = vector.load %arg4[%c0_6, %c0_7] : memref<32x32xf32, #tpu.memory_space<vmem>>, vector<32x32xf32>
    %cst_8 = arith.constant dense<0.000000e+00> : vector<32x128xf32>
    %9 = tpu.matmul %8, %7, %cst_8 {dimension_numbers = #tpu.dot_dimension_numbers<[1], [0], [0], [1], [0, 0, 1, 1], [], []>} : vector<32x32xf32>, vector<32x128xf32>, vector<32x128xf32> -> vector<32x128xf32>
    %c0_9 = arith.constant 0 : index
    %c0_10 = arith.constant 0 : index
    %10 = vector.load %arg5[%c0_9, %c0_10] : memref<32x1xf32, #tpu.memory_space<vmem>>, vector<32x1xf32>
    %11 = vector.broadcast %10 : vector<32x1xf32> to vector<32x128xf32>
    %12 = arith.addf %9, %11 : vector<32x128xf32>
    %cst_11 = arith.constant 0.000000e+00 : f32
    %13 = vector.broadcast %cst_11 : f32 to vector<32x128xf32>
    %14 = arith.maximumf %12, %13 : vector<32x128xf32>
    %c0_12 = arith.constant 0 : index
    %c0_13 = arith.constant 0 : index
    %15 = vector.load %arg6[%c0_12, %c0_13] : memref<4x32xf32, #tpu.memory_space<vmem>>, vector<4x32xf32>
    %cst_14 = arith.constant dense<0.000000e+00> : vector<4x128xf32>
    %16 = tpu.matmul %15, %14, %cst_14 {dimension_numbers = #tpu.dot_dimension_numbers<[1], [0], [0], [1], [0, 0, 1, 1], [], []>} : vector<4x32xf32>, vector<32x128xf32>, vector<4x128xf32> -> vector<4x128xf32>
    %c0_15 = arith.constant 0 : index
    %c0_16 = arith.constant 0 : index
    %17 = vector.load %arg7[%c0_15, %c0_16] : memref<4x1xf32, #tpu.memory_space<vmem>>, vector<4x1xf32>
    %18 = vector.broadcast %17 : vector<4x1xf32> to vector<4x128xf32>
    %19 = arith.addf %16, %18 : vector<4x128xf32>
    %cst_17 = arith.constant dense<0xFF800000> : vector<128xf32>
    %20 = vector.multi_reduction <maximumf>, %19, %cst_17 [0] : vector<4x128xf32> to vector<128xf32>
    %21 = vector.shape_cast %20 : vector<128xf32> to vector<1x128xf32>
    %22 = vector.broadcast %21 : vector<1x128xf32> to vector<4x128xf32>
    %23 = arith.subf %19, %22 : vector<4x128xf32>
    %24 = math.exp %23 : vector<4x128xf32>
    %cst_18 = arith.constant dense<0.000000e+00> : vector<128xf32>
    %25 = vector.multi_reduction <add>, %24, %cst_18 [0] : vector<4x128xf32> to vector<128xf32>
    %26 = vector.shape_cast %25 : vector<128xf32> to vector<1x128xf32>
    %27 = vector.broadcast %26 : vector<1x128xf32> to vector<4x128xf32>
    %28 = arith.divf %24, %27 : vector<4x128xf32>
    %c0_19 = arith.constant 0 : index
    %c0_20 = arith.constant 0 : index
    %29 = vector.load %arg8[%c0_19, %c0_20] : memref<4x128xf32, #tpu.memory_space<vmem>>, vector<4x128xf32>
    tpu.vector_store %arg8[%c0_19, %c0_20], %28 {strides = array<i32>} : memref<4x128xf32, #tpu.memory_space<vmem>>, vector<4x128xf32>,
    return
  }
  func.func @transform_0(%arg0: i32) -> (i32, i32) {
    %c0_i32 = arith.constant 0 : i32
    %c0_i32_0 = arith.constant 0 : i32
    return %c0_i32, %arg0 : i32, i32
  }
  func.func @transform_1(%arg0: i32) -> (i32, i32) {
    %c0_i32 = arith.constant 0 : i32
    %c0_i32_0 = arith.constant 0 : i32
    %c0_i32_1 = arith.constant 0 : i32
    return %c0_i32, %c0_i32_0 : i32, i32
  }
  func.func @transform_2(%arg0: i32) -> (i32, i32) {
    %c0_i32 = arith.constant 0 : i32
    %c0_i32_0 = arith.constant 0 : i32
    %c0_i32_1 = arith.constant 0 : i32
    return %c0_i32, %c0_i32_0 : i32, i32
  }
  func.func @transform_3(%arg0: i32) -> (i32, i32) {
    %c0_i32 = arith.constant 0 : i32
    %c0_i32_0 = arith.constant 0 : i32
    %c0_i32_1 = arith.constant 0 : i32
    return %c0_i32, %c0_i32_0 : i32, i32
  }
  func.func @transform_4(%arg0: i32) -> (i32, i32) {
    %c0_i32 = arith.constant 0 : i32
    %c0_i32_0 = arith.constant 0 : i32
    %c0_i32_1 = arith.constant 0 : i32
    return %c0_i32, %c0_i32_0 : i32, i32
  }
  func.func @transform_5(%arg0: i32) -> (i32, i32) {
    %c0_i32 = arith.constant 0 : i32
    %c0_i32_0 = arith.constant 0 : i32
    %c0_i32_1 = arith.constant 0 : i32
    return %c0_i32, %c0_i32_0 : i32, i32
  }
  func.func @transform_6(%arg0: i32) -> (i32, i32) {
    %c0_i32 = arith.constant 0 : i32
    %c0_i32_0 = arith.constant 0 : i32
    %c0_i32_1 = arith.constant 0 : i32
    return %c0_i32, %c0_i32_0 : i32, i32
  }
  func.func @transform_7(%arg0: i32) -> (i32, i32) {
    %c0_i32 = arith.constant 0 : i32
    %c0_i32_0 = arith.constant 0 : i32
    return %c0_i32, %arg0 : i32, i32
  }
}

</mosaic_0001>

<llo_original>
// kernel: tpu_custom_call.1
$region0: #{tpu_custom_call.1}
  #allocation0 [shape = 'u32[]', space=smem, size = 0x4, offset = 0x4, fixed_abs, tag = 'smem constant byte address 0x4 - core index']
  #allocation1 [shape = 'u32[144,128]{1,0:T(1,128)}', space=vmem, size = 0x12000, scoped, tag = 'internal scratch']
  %s0 = inlined_call_operand.vmem [shape: f32[16,256], index: 0, kind: input, shape index: {}]
  %s1 = inlined_call_operand.vmem [shape: f32[32,16], index: 1, kind: input, shape index: {}]
  %s2 = inlined_call_operand.vmem [shape: f32[32,1], index: 2, kind: input, shape index: {}]
  %s3 = inlined_call_operand.vmem [shape: f32[32,32], index: 3, kind: input, shape index: {}]
  %s4 = inlined_call_operand.vmem [shape: f32[32,1], index: 4, kind: input, shape index: {}]
  %s5 = inlined_call_operand.vmem [shape: f32[4,32], index: 5, kind: input, shape index: {}]
  %s6 = inlined_call_operand.vmem [shape: f32[4,1], index: 6, kind: input, shape index: {}]
  %s7 = inlined_call_operand.hbm [shape: f32[4,256], index: 7, kind: output, shape index: {}]
  %s8 = sld [smem:[#allocation0]]
  $region99: #{tpu_custom_call.1} parent=0
    _
  %s10 = ssub.s32 1, %s8
  %s11 = scalar_select 0, %s10, %s8
  $region1: #{tpu_custom_call.1} parent=0
    #allocation2 [shape = 'u8[16384]{0}', space=vmem, size = 0x4000, scoped, tag = 'input window, operand 0']
    #allocation3 [shape = 'u8[4096]{0}', space=vmem, size = 0x1000, scoped, tag = 'output window, operand 0']
    #allocation4 [shape = 's32[2]{0}', space=sflag, size = 0x8, scoped, tag = 'scoped memory for tpu_custom_call.1']
    %12 = vsyncpa [#allocation4], 0
    %s13 = scalar_lea.sflag [#allocation4], 1
    %14 = vsyncpa %s13, 0
    loop: start=0, step=1, limit=4
    $region2: #{tpu_custom_call.1} parent=1 // loop_pre_header
      _
    $region3: #{tpu_custom_call.1} parent=1 // loop_header
      %s16 = sphi 0, %s20
      %p17 = scmp.ge.s32.totalorder %s16, 4
      %s26 = sphi 0, %s28
      %s29 = sphi 0, %s26
      %s30 = sphi 0, %s29
      %s46 = sphi 0, %s30
      %s50 = sphi 0, %s50
      %s52 = sphi 0, %s50
      %s53 = sphi 0, %s52
      %s67 = sphi 0, %s53
      %s71 = sphi 0, %s71
      %s73 = sphi 0, %s71
      %s74 = sphi 0, %s73
      %s88 = sphi 0, %s74
      %s92 = sphi 0, %s92
      %s94 = sphi 0, %s92
      %s95 = sphi 0, %s94
      %s109 = sphi 0, %s95
      %s113 = sphi 0, %s113
      %s115 = sphi 0, %s113
      %s116 = sphi 0, %s115
      %s130 = sphi 0, %s116
      %s134 = sphi 0, %s134
      %s136 = sphi 0, %s134
      %s137 = sphi 0, %s136
      %s151 = sphi 0, %s137
      %s155 = sphi 0, %s155
      %s157 = sphi 0, %s155
      %s158 = sphi 0, %s157
      %s172 = sphi 0, %s158
      %s178 = sphi 0, %s180
      %s181 = sphi 0, %s178
      %s182 = sphi 0, %s181
      %s198 = sphi 0, %s182
    $region4: #{tpu_custom_call.1} parent=1 // loop_header_branch
      %19 = sbr.rel (%p17) target = $region8
    $region5: #{tpu_custom_call.1} parent=1 // loop_body
      %s21 = ssub.s32 %s16, 1
      %s22 = ssub.s32 %s16, 2
      %s23 = sadd.s32 %s16, 1
      %s24 = ssub.s32 %s16, %s23
      %p25 = scmp.eq.s32.totalorder %s24, 0
      %s27 = sadd.s32 %s26, 1
      %s28 = scalar_select %p25, %s26, %s27
      %p31 = pneg %p25
      %p32 = scmp.eq.s32.totalorder %s16, 1
      %p33 = por %p31, %p32
      %p34 = scmp.ne.s32.totalorder %s26, %s29
      %p35 = scmp.eq.s32.totalorder %s16, 0
      %p36 = por %p34, %p35
      %p37 = scmp.ne.s32.totalorder %s26, %s29
      %p38 = scmp.eq.s32.totalorder %s21, 1
      %p39 = por %p37, %p38
      %p40 = scmp.ne.s32.totalorder %s29, %s30
      %p41 = scmp.eq.s32.totalorder %s21, 0
      %p42 = por %p40, %p41
      %p43 = scmp.ne.s32.totalorder %s29, %s30
      %p44 = scmp.eq.s32.totalorder %s22, 1
      %p45 = por %p43, %p44
      %p47 = scmp.ne.s32.totalorder %s30, %s46
      %p48 = scmp.eq.s32.totalorder %s22, 0
      %p49 = por %p47, %p48
      %s51 = sadd.s32 %s50, 1
      %p54 = scmp.eq.s32.totalorder %s16, 1
      %p55 = scmp.ne.s32.totalorder %s50, %s52
      %p56 = scmp.eq.s32.totalorder %s16, 0
      %p57 = por %p55, %p56
      %p58 = scmp.ne.s32.totalorder %s50, %s52
      %p59 = scmp.eq.s32.totalorder %s21, 1
      %p60 = por %p58, %p59
      %p61 = scmp.ne.s32.totalorder %s52, %s53
      %p62 = scmp.eq.s32.totalorder %s21, 0
      %p63 = por %p61, %p62
      %p64 = scmp.ne.s32.totalorder %s52, %s53
      %p65 = scmp.eq.s32.totalorder %s22, 1
      %p66 = por %p64, %p65
      %p68 = scmp.ne.s32.totalorder %s53, %s67
      %p69 = scmp.eq.s32.totalorder %s22, 0
      %p70 = por %p68, %p69
      %s72 = sadd.s32 %s71, 1
      %p75 = scmp.eq.s32.totalorder %s16, 1
      %p76 = scmp.ne.s32.totalorder %s71, %s73
      %p77 = scmp.eq.s32.totalorder %s16, 0
      %p78 = por %p76, %p77
      %p79 = scmp.ne.s32.totalorder %s71, %s73
      %p80 = scmp.eq.s32.totalorder %s21, 1
      %p81 = por %p79, %p80
      %p82 = scmp.ne.s32.totalorder %s73, %s74
      %p83 = scmp.eq.s32.totalorder %s21, 0
      %p84 = por %p82, %p83
      %p85 = scmp.ne.s32.totalorder %s73, %s74
      %p86 = scmp.eq.s32.totalorder %s22, 1
      %p87 = por %p85, %p86
      %p89 = scmp.ne.s32.totalorder %s74, %s88
      %p90 = scmp.eq.s32.totalorder %s22, 0
      %p91 = por %p89, %p90
      %s93 = sadd.s32 %s92, 1
      %p96 = scmp.eq.s32.totalorder %s16, 1
      %p97 = scmp.ne.s32.totalorder %s92, %s94
      %p98 = scmp.eq.s32.totalorder %s16, 0
      %p99 = por %p97, %p98
      %p100 = scmp.ne.s32.totalorder %s92, %s94
      %p101 = scmp.eq.s32.totalorder %s21, 1
      %p102 = por %p100, %p101
      %p103 = scmp.ne.s32.totalorder %s94, %s95
      %p104 = scmp.eq.s32.totalorder %s21, 0
      %p105 = por %p103, %p104
      %p106 = scmp.ne.s32.totalorder %s94, %s95
      %p107 = scmp.eq.s32.totalorder %s22, 1
      %p108 = por %p106, %p107
      %p110 = scmp.ne.s32.totalorder %s95, %s109
      %p111 = scmp.eq.s32.totalorder %s22, 0
      %p112 = por %p110, %p111
      %s114 = sadd.s32 %s113, 1
      %p117 = scmp.eq.s32.totalorder %s16, 1
      %p118 = scmp.ne.s32.totalorder %s113, %s115
      %p119 = scmp.eq.s32.totalorder %s16, 0
      %p120 = por %p118, %p119
      %p121 = scmp.ne.s32.totalorder %s113, %s115
      %p122 = scmp.eq.s32.totalorder %s21, 1
      %p123 = por %p121, %p122
      %p124 = scmp.ne.s32.totalorder %s115, %s116
      %p125 = scmp.eq.s32.totalorder %s21, 0
      %p126 = por %p124, %p125
      %p127 = scmp.ne.s32.totalorder %s115, %s116
      %p128 = scmp.eq.s32.totalorder %s22, 1
      %p129 = por %p127, %p128
      %p131 = scmp.ne.s32.totalorder %s116, %s130
      %p132 = scmp.eq.s32.totalorder %s22, 0
      %p133 = por %p131, %p132
      %s135 = sadd.s32 %s134, 1
      %p138 = scmp.eq.s32.totalorder %s16, 1
      %p139 = scmp.ne.s32.totalorder %s134, %s136
      %p140 = scmp.eq.s32.totalorder %s16, 0
      %p141 = por %p139, %p140
      %p142 = scmp.ne.s32.totalorder %s134, %s136
      %p143 = scmp.eq.s32.totalorder %s21, 1
      %p144 = por %p142, %p143
      %p145 = scmp.ne.s32.totalorder %s136, %s137
      %p146 = scmp.eq.s32.totalorder %s21, 0
      %p147 = por %p145, %p146
      %p148 = scmp.ne.s32.totalorder %s136, %s137
      %p149 = scmp.eq.s32.totalorder %s22, 1
      %p150 = por %p148, %p149
      %p152 = scmp.ne.s32.totalorder %s137, %s151
      %p153 = scmp.eq.s32.totalorder %s22, 0
      %p154 = por %p152, %p153
      %s156 = sadd.s32 %s155, 1
      %p159 = scmp.eq.s32.totalorder %s16, 1
      %p160 = scmp.ne.s32.totalorder %s155, %s157
      %p161 = scmp.eq.s32.totalorder %s16, 0
      %p162 = por %p160, %p161
      %p163 = scmp.ne.s32.totalorder %s155, %s157
      %p164 = scmp.eq.s32.totalorder %s21, 1
      %p165 = por %p163, %p164
      %p166 = scmp.ne.s32.totalorder %s157, %s158
      %p167 = scmp.eq.s32.totalorder %s21, 0
      %p168 = por %p166, %p167
      %p169 = scmp.ne.s32.totalorder %s157, %s158
      %p170 = scmp.eq.s32.totalorder %s22, 1
      %p171 = por %p169, %p170
      %p173 = scmp.ne.s32.totalorder %s158, %s172
      %p174 = scmp.eq.s32.totalorder %s22, 0
      %p175 = por %p173, %p174
      %s176 = ssub.s32 %s16, %s23
      %p177 = scmp.eq.s32.totalorder %s176, 0
      %s179 = sadd.s32 %s178, 1
      %s180 = scalar_select %p177, %s178, %s179
      %p183 = pneg %p177
      %p184 = scmp.eq.s32.totalorder %s16, 1
      %p185 = por %p183, %p184
      %p186 = scmp.ne.s32.totalorder %s178, %s181
      %p187 = scmp.eq.s32.totalorder %s16, 0
      %p188 = por %p186, %p187
      %p189 = scmp.ne.s32.totalorder %s178, %s181
      %p190 = scmp.eq.s32.totalorder %s21, 1
      %p191 = por %p189, %p190
      %p192 = scmp.ne.s32.totalorder %s181, %s182
      %p193 = scmp.eq.s32.totalorder %s21, 0
      %p194 = por %p192, %p193
      %p195 = scmp.ne.s32.totalorder %s181, %s182
      %p196 = scmp.eq.s32.totalorder %s22, 1
      %p197 = por %p195, %p196
      %p199 = scmp.ne.s32.totalorder %s182, %s198
      %p200 = scmp.eq.s32.totalorder %s22, 0
      %p201 = por %p199, %p200
      %p202 = scmp.le.s32.totalorder 1, %s16
      %p203 = scmp.lt.s32.totalorder %s16, 3
      %p204 = pnand %p202, %p203
      %p205 = pneg %p204
      // Predicated region
      $region9: #{tpu_custom_call.1} parent=5 // pred_check
        _
      $region10: #{tpu_custom_call.1} parent=5 // pred_check_branch
        %207 = sbr.rel (%p204) target = $region12
      $region11: #{tpu_custom_call.1} parent=5 // pred_region
        %s208 = ssub.s32 %s16, 1
        // Predicated region
        $region13: #{tpu_custom_call.1} parent=11 // pred_check
          %p209 = pneg %p63
        $region14: #{tpu_custom_call.1} parent=11 // pred_check_branch
          %211 = sbr.rel (%p209) target = $region16
        $region15: #{tpu_custom_call.1} parent=11 // pred_region
          _
        $region16: #{tpu_custom_call.1} parent=11 // pred_fallthru
          _
        // Predicated region
        $region17: #{tpu_custom_call.1} parent=11 // pred_check
          %p212 = pneg %p84
        $region18: #{tpu_custom_call.1} parent=11 // pred_check_branch
          %214 = sbr.rel (%p212) target = $region20
        $region19: #{tpu_custom_call.1} parent=11 // pred_region
          _
        $region20: #{tpu_custom_call.1} parent=11 // pred_fallthru
          _
        // Predicated region
        $region21: #{tpu_custom_call.1} parent=11 // pred_check
          %p215 = pneg %p105
        $region22: #{tpu_custom_call.1} parent=11 // pred_check_branch
          %217 = sbr.rel (%p215) target = $region24
        $region23: #{tpu_custom_call.1} parent=11 // pred_region
          _
        $region24: #{tpu_custom_call.1} parent=11 // pred_fallthru
          _
        // Predicated region
        $region25: #{tpu_custom_call.1} parent=11 // pred_check
          %p218 = pneg %p126
        $region26: #{tpu_custom_call.1} parent=11 // pred_check_branch
          %220 = sbr.rel (%p218) target = $region28
        $region27: #{tpu_custom_call.1} parent=11 // pred_region
          _
        $region28: #{tpu_custom_call.1} parent=11 // pred_fallthru
          _
        // Predicated region
        $region29: #{tpu_custom_call.1} parent=11 // pred_check
          %p221 = pneg %p147
        $region30: #{tpu_custom_call.1} parent=11 // pred_check_branch
          %223 = sbr.rel (%p221) target = $region32
        $region31: #{tpu_custom_call.1} parent=11 // pred_region
          _
        $region32: #{tpu_custom_call.1} parent=11 // pred_fallthru
          _
        // Predicated region
        $region33: #{tpu_custom_call.1} parent=11 // pred_check
          %p224 = pneg %p168
        $region34: #{tpu_custom_call.1} parent=11 // pred_check_branch
          %226 = sbr.rel (%p224) target = $region36
        $region35: #{tpu_custom_call.1} parent=11 // pred_region
          _
        $region36: #{tpu_custom_call.1} parent=11 // pred_fallthru
          _
      $region12: #{tpu_custom_call.1} parent=5 // pred_fallthru
        _
      %p227 = scmp.lt.s32.totalorder %s16, 2
      // Predicated region
      $region37: #{tpu_custom_call.1} parent=5 // pred_check
        %p228 = pneg %p227
      $region38: #{tpu_custom_call.1} parent=5 // pred_check_branch
        %230 = sbr.rel (%p228) target = $region40
      $region39: #{tpu_custom_call.1} parent=5 // pred_region
        // Predicated region
        $region41: #{tpu_custom_call.1} parent=39 // pred_check
          %p231 = pneg %p36
        $region42: #{tpu_custom_call.1} parent=39 // pred_check_branch
          %233 = sbr.rel (%p231) target = $region44
        $region43: #{tpu_custom_call.1} parent=39 // pred_region
          %s234 = sand.u32 %s26, 1
          %s235 = sand.u32 %s26, 1
          %s236 = smul.addr %s235, 16
          %s237 = scalar_lea.vmem [#allocation2], %s236
          %s238 = smul.addr %s16, 8
          %s239 = scalar_lea.vmem %s0, %s238
          // Predicated region
          $region45: #{tpu_custom_call.1} parent=43 // pred_check
            _
          $region46: #{tpu_custom_call.1} parent=43 // pred_check_branch
            %241 = sbr.rel (0) target = $region48
          $region47: #{tpu_custom_call.1} parent=43 // pred_region
            // Predicated region
            $region49: #{tpu_custom_call.1} parent=47 // pred_check
              _
            $region50: #{tpu_custom_call.1} parent=47 // pred_check_branch
              %243 = sbr.rel (0) target = $region52
            $region51: #{tpu_custom_call.1} parent=47 // pred_region
              // Predicated region
              $region64: #{tpu_custom_call.1} parent=51 // pred_check
                _
              $region65: #{tpu_custom_call.1} parent=51 // pred_check_branch
                %260 = sbr.rel (0) target = $region67
              $region66: #{tpu_custom_call.1} parent=51 // pred_region
                loop: start=0, step=1, limit=1
                $region68: #{tpu_custom_call.1} parent=66 // loop_pre_header
                  _
                $region69: #{tpu_custom_call.1} parent=66 // loop_header
                  %s262 = sphi 0, %s266
                  %p263 = scmp.ge.s32.totalorder %s262, 1
                  %s267 = sphi %s239, %s239
                  %s268 = sphi %s237, %s237
                $region70: #{tpu_custom_call.1} parent=66 // loop_header_branch
                  %265 = sbr.rel (%p263) target = $region74
                $region71: #{tpu_custom_call.1} parent=66 // loop_body
                  %v269 = vld [vmem:[%s267] sm:$0xff]
                  %270 = vst [vmem:[%s268] sm:$0xff] %v269
                  %v271 = vld [vmem:[%s267 + $0x10] sm:$0xff]
                  %272 = vst [vmem:[%s268 + $0x8] sm:$0xff] %v271
                $region72: #{tpu_custom_call.1} parent=66 // loop_footer
                  %s266 = sadd.s32 1, %s262
                $region73: #{tpu_custom_call.1} parent=66 // loop_footer_branch
                  %261 = sbr.rel target = $region69
                $region74: #{tpu_custom_call.1} parent=66 // loop_exit
                  _
              $region67: #{tpu_custom_call.1} parent=51 // pred_fallthru
                _
              // Predicated region
              $region75: #{tpu_custom_call.1} parent=51 // pred_check
                _
              $region76: #{tpu_custom_call.1} parent=51 // pred_check_branch
                %274 = sbr.rel target = $region78
              $region77: #{tpu_custom_call.1} parent=51 // pred_region
                _
              $region78: #{tpu_custom_call.1} parent=51 // pred_fallthru
                _
            $region52: #{tpu_custom_call.1} parent=47 // pred_fallthru
              _
            // Predicated region
            $region53: #{tpu_custom_call.1} parent=47 // pred_check
              _
            $region54: #{tpu_custom_call.1} parent=47 // pred_check_branch
              %245 = sbr.rel target = $region56
            $region55: #{tpu_custom_call.1} parent=47 // pred_region
              loop: start=0, step=1, limit=1
              $region57: #{tpu_custom_call.1} parent=55 // loop_pre_header
                _
              $region58: #{tpu_custom_call.1} parent=55 // loop_header
                %s248 = sphi 0, %s252
                %p249 = scmp.ge.s32.totalorder %s248, 1
                %s253 = sphi %s239, %s239
                %s254 = sphi %s237, %s237
              $region59: #{tpu_custom_call.1} parent=55 // loop_header_branch
                %251 = sbr.rel (%p249) target = $region63
              $region60: #{tpu_custom_call.1} parent=55 // loop_body
                %v255 = vld [vmem:[%s253] sm:$0xff]
                %256 = vst [vmem:[%s254] sm:$0xff] %v255
                %v257 = vld [vmem:[%s253 + $0x10] sm:$0xff]
                %258 = vst [vmem:[%s254 + $0x8] sm:$0xff] %v257
              $region61: #{tpu_custom_call.1} parent=55 // loop_footer
                %s252 = sadd.s32 1, %s248
              $region62: #{tpu_custom_call.1} parent=55 // loop_footer_branch
                %247 = sbr.rel target = $region58
              $region63: #{tpu_custom_call.1} parent=55 // loop_exit
                _
            $region56: #{tpu_custom_call.1} parent=47 // pred_fallthru
              _
          $region48: #{tpu_custom_call.1} parent=43 // pred_fallthru
            _
          %275 = vnop
        $region44: #{tpu_custom_call.1} parent=39 // pred_fallthru
          _
      $region40: #{tpu_custom_call.1} parent=5 // pred_fallthru
        _
      %p276 = scmp.le.s32.totalorder 1, %s16
      %p277 = scmp.lt.s32.totalorder %s16, 3
      %p278 = pnand %p276, %p277
      %p279 = pneg %p278
      // Predicated region
      $region79: #{tpu_custom_call.1} parent=5 // pred_check
        _
      $region80: #{tpu_custom_call.1} parent=5 // pred_check_branch
        %281 = sbr.rel (%p278) target = $region82
      $region81: #{tpu_custom_call.1} parent=5 // pred_region
        %s282 = ssub.s32 %s16, 1
        %s283 = sand.u32 %s29, 1
        %s284 = sand.u32 %s29, 1
        %s285 = smul.addr %s284, 16
        %s286 = scalar_lea.vmem [#allocation2], %s285
        // Predicated region
        $region83: #{tpu_custom_call.1} parent=81 // pred_check
          %p287 = pneg %p42
        $region84: #{tpu_custom_call.1} parent=81 // pred_check_branch
          %289 = sbr.rel (%p287) target = $region86
        $region85: #{tpu_custom_call.1} parent=81 // pred_region
          _
        $region86: #{tpu_custom_call.1} parent=81 // pred_fallthru
          _
        %s290 = sand.u32 %s29, 1
        %s291 = sand.u32 %s29, 1
        %s292 = smul.addr %s291, 16
        %s293 = scalar_lea.vmem [#allocation2], %s292
        %p294 = pneg %p42
        %p295 = pneg %p39
        %p296 = pneg %p63
        %p297 = pneg %p60
        %p298 = pneg %p84
        %p299 = pneg %p81
        %p300 = pneg %p105
        %p301 = pneg %p102
        %p302 = pneg %p126
        %p303 = pneg %p123
        %p304 = pneg %p147
        %p305 = pneg %p144
        %p306 = pneg %p168
        %p307 = pneg %p165
        %p308 = pneg %p194
        %p309 = pneg %p191
        %s310 = sand.u32 %s181, 1
        %s311 = scalar_lea.sflag [#allocation4], %s310
        %s312 = sand.u32 %s181, 1
        %s313 = smul.addr %s312, 4
        %s314 = scalar_lea.vmem [#allocation3], %s313
        %v315 = vld [vmem:[%s286] sm:$0xff]
        %v316 = vld [vmem:[%s286 + $0x8] sm:$0xff]
        %v317 = vld [vmem:[%s1] sm:$0xff]
        %v318 = vld [vmem:[%s1 + $0x8] sm:$0xff]
        %v319 = vld [vmem:[%s1 + $0x10] sm:$0xff]
        %v320 = vld [vmem:[%s1 + $0x18] sm:$0xff]
        %v321 = vld [vmem:[%s2] sm:$0xff]
        %v322 = vld [vmem:[%s2 + $0x8] sm:$0xff]
        %v323 = vld [vmem:[%s2 + $0x10] sm:$0xff]
        %v324 = vld [vmem:[%s2 + $0x18] sm:$0xff]
        %326 = vset.pattern.permute.xlu0 0
        %327 = vperm.xlu0 %326, %v321
        %v328 = vpop.permute.xlu0 %327
        %331 = vset.pattern.permute.xlu0 0
        %332 = vperm.xlu0 %331, %v322
        %v333 = vpop.permute.xlu0 %332
        %336 = vset.pattern.permute.xlu0 0
        %337 = vperm.xlu0 %336, %v323
        %v338 = vpop.permute.xlu0 %337
        %341 = vset.pattern.permute.xlu0 0
        %342 = vperm.xlu0 %341, %v324
        %v343 = vpop.permute.xlu0 %342
        %vm345 = vcmask 130048
        %v347 = vsel %vm345, %v317, 0
        %v350 = vsel %vm345, %v318, 0
        %v353 = vsel %vm345, %v319, 0
        %v356 = vsel %vm345, %v320, 0
        %358 = vmatprep.subr.mxu0 0.0
        %359 = vmatpush1.msra.mxu0 %v315
        %360 = vmatprep.subr.mxu0 0.0
        %361 = vmatpush1.msra.mxu0 %v316
        %362 = vmatprep.subr.mxu0 0.0
        %363 = vmatpush1.msra.mxu0 0.0
        %364 = vmatprep.subr.mxu0 0.0
        %365 = vmatpush1.msra.mxu0 0.0
        %366 = vmatprep.subr.mxu0 0.0
        %367 = vmatpush1.msra.mxu0 0.0
        %368 = vmatprep.subr.mxu0 0.0
        %369 = vmatpush1.msra.mxu0 0.0
        %370 = vmatprep.subr.mxu0 0.0
        %371 = vmatpush1.msra.mxu0 0.0
        %372 = vmatprep.subr.mxu0 0.0
        %373 = vmatpush1.msra.mxu0 0.0
        %374 = vmatprep.subr.mxu0 0.0
        %375 = vmatpush1.msra.mxu0 0.0
        %376 = vmatprep.subr.mxu0 0.0
        %377 = vmatpush1.msra.mxu0 0.0
        %378 = vmatprep.subr.mxu0 0.0
        %379 = vmatpush1.msra.mxu0 0.0
        %380 = vmatprep.subr.mxu0 0.0
        %381 = vmatpush1.msra.mxu0 0.0
        %382 = vmatprep.subr.mxu0 0.0
        %383 = vmatpush1.msra.mxu0 0.0
        %384 = vmatprep.subr.mxu0 0.0
        %385 = vmatpush1.msra.mxu0 0.0
        %386 = vmatprep.subr.mxu0 0.0
        %387 = vmatpush1.msra.mxu0 0.0
        %388 = vmatprep.subr.mxu0 0.0
        %389 = vmatpush1.msra.mxu0 0.0
        %390 = vmatprep.subr.mxu0 0.0
        %391 = vmatpush1.msra.mxu0 0.0
        %392 = vmatprep.subr.mxu0 0.0
        %393 = vmatpush1.msra.mxu0 0.0
        %394 = vmatprep.subr.mxu0 0.0
        %395 = vmatpush1.msra.mxu0 0.0
        %396 = vmatprep.subr.mxu0 0.0
        %397 = vmatpush1.msra.mxu0 0.0
        %398 = vmatprep.subr.mxu0 0.0
        %399 = vmatpush1.msra.mxu0 0.0
        %400 = vmatprep.subr.mxu0 0.0
        %401 = vmatpush1.msra.mxu0 0.0
        %402 = vmatprep.subr.mxu0 0.0
        %403 = vmatpush1.msra.mxu0 0.0
        %404 = vmatprep.subr.mxu0 0.0
        %405 = vmatpush1.msra.mxu0 0.0
        %406 = vmatprep.subr.mxu0 0.0
        %407 = vmatpush1.msra.mxu0 0.0
        %408 = vmatprep.subr.mxu0 0.0
        %409 = vmatpush1.msra.mxu0 0.0
        %410 = vmatprep.subr.mxu0 0.0
        %411 = vmatpush1.msra.mxu0 0.0
        %412 = vmatprep.subr.mxu0 0.0
        %413 = vmatpush1.msra.mxu0 0.0
        %414 = vmatprep.subr.mxu0 0.0
        %415 = vmatpush1.msra.mxu0 0.0
        %416 = vmatprep.subr.mxu0 0.0
        %417 = vmatpush1.msra.mxu0 0.0
        %418 = vmatprep.subr.mxu0 0.0
        %419 = vmatpush1.msra.mxu0 0.0
        %420 = vmatprep.subr.mxu0 0.0
        %421 = vmatpush1.msra.mxu0 0.0
        %422 = vmatprep.mubr.f32.mxu0 0.0
        %423 = vmatmul.mubr.f32.gmra.mrb[0].mxu0 %v347
        %v424 = vpop.f32.mrb[0].mxu0
        %v425 = vadd.f32 %v328, %v424
        %v426 = vpop.f32.mrb[0].mxu0
        %427 = vmatprep.mubr.f32.mxu0 0.0
        %428 = vmatmul.mubr.f32.gmra.mrb[0].mxu0 %v350
        %v429 = vpop.f32.mrb[0].mxu0
        %v430 = vadd.f32 %v333, %v429
        %v431 = vpop.f32.mrb[0].mxu0
        %432 = vmatprep.mubr.f32.mxu0 0.0
        %433 = vmatmul.mubr.f32.gmra.mrb[0].mxu0 %v353
        %v434 = vpop.f32.mrb[0].mxu0
        %v435 = vadd.f32 %v338, %v434
        %v436 = vpop.f32.mrb[0].mxu0
        %437 = vmatprep.mubr.f32.mxu0 0.0
        %438 = vmatmul.mubr.f32.gmra.mrb[0].mxu0 %v356
        %v439 = vpop.f32.mrb[0].mxu0
        %v440 = vadd.f32 %v343, %v439
        %v441 = vpop.f32.mrb[0].mxu0
        %442 = vdwg.mxu0
        %v443 = vmax.f32 %v425, 0.0
        %v444 = vmax.f32 %v430, 0.0
        %v445 = vmax.f32 %v435, 0.0
        %v446 = vmax.f32 %v440, 0.0
        %v447 = vld [vmem:[%s3] sm:$0xff]
        %v448 = vld [vmem:[%s3 + $0x8] sm:$0xff]
        %v449 = vld [vmem:[%s3 + $0x10] sm:$0xff]
        %v450 = vld [vmem:[%s3 + $0x18] sm:$0xff]
        %v451 = vld [vmem:[%s4] sm:$0xff]
        %v452 = vld [vmem:[%s4 + $0x8] sm:$0xff]
        %v453 = vld [vmem:[%s4 + $0x10] sm:$0xff]
        %v454 = vld [vmem:[%s4 + $0x18] sm:$0xff]
        %456 = vset.pattern.permute.xlu0 0
        %457 = vperm.xlu0 %456, %v451
        %v458 = vpop.permute.xlu0 %457
        %461 = vset.pattern.permute.xlu0 0
        %462 = vperm.xlu0 %461, %v452
        %v463 = vpop.permute.xlu0 %462
        %466 = vset.pattern.permute.xlu0 0
        %467 = vperm.xlu0 %466, %v453
        %v468 = vpop.permute.xlu0 %467
        %471 = vset.pattern.permute.xlu0 0
        %472 = vperm.xlu0 %471, %v454
        %v473 = vpop.permute.xlu0 %472
        %vm475 = vcmask 261120
        %v477 = vsel %vm475, %v447, 0
        %v480 = vsel %vm475, %v448, 0
        %v483 = vsel %vm475, %v449, 0
        %v486 = vsel %vm475, %v450, 0
        %488 = vmatprep.subr.mxu0 0.0
        %489 = vmatpush1.msra.mxu0 %v443
        %490 = vmatprep.subr.mxu0 0.0
        %491 = vmatpush1.msra.mxu0 %v444
        %492 = vmatprep.subr.mxu0 0.0
        %493 = vmatpush1.msra.mxu0 %v445
        %494 = vmatprep.subr.mxu0 0.0
        %495 = vmatpush1.msra.mxu0 %v446
        %496 = vmatprep.subr.mxu0 0.0
        %497 = vmatpush1.msra.mxu0 0.0
        %498 = vmatprep.subr.mxu0 0.0
        %499 = vmatpush1.msra.mxu0 0.0
        %500 = vmatprep.subr.mxu0 0.0
        %501 = vmatpush1.msra.mxu0 0.0
        %502 = vmatprep.subr.mxu0 0.0
        %503 = vmatpush1.msra.mxu0 0.0
        %504 = vmatprep.subr.mxu0 0.0
        %505 = vmatpush1.msra.mxu0 0.0
        %506 = vmatprep.subr.mxu0 0.0
        %507 = vmatpush1.msra.mxu0 0.0
        %508 = vmatprep.subr.mxu0 0.0
        %509 = vmatpush1.msra.mxu0 0.0
        %510 = vmatprep.subr.mxu0 0.0
        %511 = vmatpush1.msra.mxu0 0.0
        %512 = vmatprep.subr.mxu0 0.0
        %513 = vmatpush1.msra.mxu0 0.0
        %514 = vmatprep.subr.mxu0 0.0
        %515 = vmatpush1.msra.mxu0 0.0
        %516 = vmatprep.subr.mxu0 0.0
        %517 = vmatpush1.msra.mxu0 0.0
        %518 = vmatprep.subr.mxu0 0.0
        %519 = vmatpush1.msra.mxu0 0.0
        %520 = vmatprep.subr.mxu0 0.0
        %521 = vmatpush1.msra.mxu0 0.0
        %522 = vmatprep.subr.mxu0 0.0
        %523 = vmatpush1.msra.mxu0 0.0
        %524 = vmatprep.subr.mxu0 0.0
        %525 = vmatpush1.msra.mxu0 0.0
        %526 = vmatprep.subr.mxu0 0.0
        %527 = vmatpush1.msra.mxu0 0.0
        %528 = vmatprep.subr.mxu0 0.0
        %529 = vmatpush1.msra.mxu0 0.0
        %530 = vmatprep.subr.mxu0 0.0
        %531 = vmatpush1.msra.mxu0 0.0
        %532 = vmatprep.subr.mxu0 0.0
        %533 = vmatpush1.msra.mxu0 0.0
        %534 = vmatprep.subr.mxu0 0.0
        %535 = vmatpush1.msra.mxu0 0.0
        %536 = vmatprep.subr.mxu0 0.0
        %537 = vmatpush1.msra.mxu0 0.0
        %538 = vmatprep.subr.mxu0 0.0
        %539 = vmatpush1.msra.mxu0 0.0
        %540 = vmatprep.subr.mxu0 0.0
        %541 = vmatpush1.msra.mxu0 0.0
        %542 = vmatprep.subr.mxu0 0.0
        %543 = vmatpush1.msra.mxu0 0.0
        %544 = vmatprep.subr.mxu0 0.0
        %545 = vmatpush1.msra.mxu0 0.0
        %546 = vmatprep.subr.mxu0 0.0
        %547 = vmatpush1.msra.mxu0 0.0
        %548 = vmatprep.subr.mxu0 0.0
        %549 = vmatpush1.msra.mxu0 0.0
        %550 = vmatprep.subr.mxu0 0.0
        %551 = vmatpush1.msra.mxu0 0.0
        %552 = vmatprep.mubr.f32.mxu0 0.0
        %553 = vmatmul.mubr.f32.gmra.mrb[0].mxu0 %v477
        %v554 = vpop.f32.mrb[0].mxu0
        %v555 = vadd.f32 %v458, %v554
        %v556 = vpop.f32.mrb[0].mxu0
        %557 = vmatprep.mubr.f32.mxu0 0.0
        %558 = vmatmul.mubr.f32.gmra.mrb[0].mxu0 %v480
        %v559 = vpop.f32.mrb[0].mxu0
        %v560 = vadd.f32 %v463, %v559
        %v561 = vpop.f32.mrb[0].mxu0
        %562 = vmatprep.mubr.f32.mxu0 0.0
        %563 = vmatmul.mubr.f32.gmra.mrb[0].mxu0 %v483
        %v564 = vpop.f32.mrb[0].mxu0
        %v565 = vadd.f32 %v468, %v564
        %v566 = vpop.f32.mrb[0].mxu0
        %567 = vmatprep.mubr.f32.mxu0 0.0
        %568 = vmatmul.mubr.f32.gmra.mrb[0].mxu0 %v486
        %v569 = vpop.f32.mrb[0].mxu0
        %v570 = vadd.f32 %v473, %v569
        %v571 = vpop.f32.mrb[0].mxu0
        %572 = vdwg.mxu0
        %v573 = vmax.f32 %v555, 0.0
        %v574 = vmax.f32 %v560, 0.0
        %v575 = vmax.f32 %v565, 0.0
        %v576 = vmax.f32 %v570, 0.0
        %v577 = vld [vmem:[%s5] sm:$0xf]
        %v578 = vld [vmem:[%s6] sm:$0xf]
        %580 = vset.pattern.permute.xlu0 0
        %581 = vperm.xlu0 %580, %v578
        %v582 = vpop.permute.xlu0 %581
        %v585 = vsel %vm475, %v577, 0
        %587 = vmatprep.subr.mxu0 0.0
        %588 = vmatpush1.msra.mxu0 %v573
        %589 = vmatprep.subr.mxu0 0.0
        %590 = vmatpush1.msra.mxu0 %v574
        %591 = vmatprep.subr.mxu0 0.0
        %592 = vmatpush1.msra.mxu0 %v575
        %593 = vmatprep.subr.mxu0 0.0
        %594 = vmatpush1.msra.mxu0 %v576
        %595 = vmatprep.subr.mxu0 0.0
        %596 = vmatpush1.msra.mxu0 0.0
        %597 = vmatprep.subr.mxu0 0.0
        %598 = vmatpush1.msra.mxu0 0.0
        %599 = vmatprep.subr.mxu0 0.0
        %600 = vmatpush1.msra.mxu0 0.0
        %601 = vmatprep.subr.mxu0 0.0
        %602 = vmatpush1.msra.mxu0 0.0
        %603 = vmatprep.subr.mxu0 0.0
        %604 = vmatpush1.msra.mxu0 0.0
        %605 = vmatprep.subr.mxu0 0.0
        %606 = vmatpush1.msra.mxu0 0.0
        %607 = vmatprep.subr.mxu0 0.0
        %608 = vmatpush1.msra.mxu0 0.0
        %609 = vmatprep.subr.mxu0 0.0
        %610 = vmatpush1.msra.mxu0 0.0
        %611 = vmatprep.subr.mxu0 0.0
        %612 = vmatpush1.msra.mxu0 0.0
        %613 = vmatprep.subr.mxu0 0.0
        %614 = vmatpush1.msra.mxu0 0.0
        %615 = vmatprep.subr.mxu0 0.0
        %616 = vmatpush1.msra.mxu0 0.0
        %617 = vmatprep.subr.mxu0 0.0
        %618 = vmatpush1.msra.mxu0 0.0
        %619 = vmatprep.subr.mxu0 0.0
        %620 = vmatpush1.msra.mxu0 0.0
        %621 = vmatprep.subr.mxu0 0.0
        %622 = vmatpush1.msra.mxu0 0.0
        %623 = vmatprep.subr.mxu0 0.0
        %624 = vmatpush1.msra.mxu0 0.0
        %625 = vmatprep.subr.mxu0 0.0
        %626 = vmatpush1.msra.mxu0 0.0
        %627 = vmatprep.subr.mxu0 0.0
        %628 = vmatpush1.msra.mxu0 0.0
        %629 = vmatprep.subr.mxu0 0.0
        %630 = vmatpush1.msra.mxu0 0.0
        %631 = vmatprep.subr.mxu0 0.0
        %632 = vmatpush1.msra.mxu0 0.0
        %633 = vmatprep.subr.mxu0 0.0
        %634 = vmatpush1.msra.mxu0 0.0
        %635 = vmatprep.subr.mxu0 0.0
        %636 = vmatpush1.msra.mxu0 0.0
        %637 = vmatprep.subr.mxu0 0.0
        %638 = vmatpush1.msra.mxu0 0.0
        %639 = vmatprep.subr.mxu0 0.0
        %640 = vmatpush1.msra.mxu0 0.0
        %641 = vmatprep.subr.mxu0 0.0
        %642 = vmatpush1.msra.mxu0 0.0
        %643 = vmatprep.subr.mxu0 0.0
        %644 = vmatpush1.msra.mxu0 0.0
        %645 = vmatprep.subr.mxu0 0.0
        %646 = vmatpush1.msra.mxu0 0.0
        %647 = vmatprep.subr.mxu0 0.0
        %648 = vmatpush1.msra.mxu0 0.0
        %649 = vmatprep.subr.mxu0 0.0
        %650 = vmatpush1.msra.mxu0 0.0
        %651 = vmatprep.mubr.f32.mxu0 0.0
        %652 = vmatmul.mubr.f32.gmra.mrb[0].mxu0 %v585
        %v653 = vpop.f32.mrb[0].mxu0
        %v654 = vadd.f32 %v582, %v653
        %v655 = vpop.f32.mrb[0].mxu0
        %656 = vdwg.mxu0
        %vm657 = vcmask 1043456
        %v658 = vsel %vm657, %v654, -inf
        %v659 = vrot.slane %v658, 4
        %v660 = vmax.f32 %v658, %v659
        %v661 = vrot.slane %v660, 2
        %v662 = vmax.f32 %v660, %v661
        %v663 = vrot.slane %v662, 1
        %v664 = vmax.f32 %v662, %v663
        %v665 = vsub.f32 %v654, %v664
        %v666 = vmul.f32 %v665, 1.442695
        %v667 = vpow.pop %v666
        %v668 = vsel %vm657, %v667, 0.0
        %v669 = vrot.slane %v668, 4
        %v670 = vadd.f32 %v668, %v669
        %v671 = vrot.slane %v670, 2
        %v672 = vadd.f32 %v670, %v671
        %v673 = vrot.slane %v672, 1
        %v674 = vadd.f32 %v672, %v673
        %v675 = vrcp.pop %v674
        %v676 = vmul.f32 %v667, %v675
        %677 = vst [vmem:[%s314] sm:$0xf] %v676
        %s678 = sand.u32 %s181, 1
        %s679 = scalar_lea.sflag [#allocation4], %s678
        %s680 = sand.u32 %s181, 1
        %s681 = smul.addr %s680, 4
        %s682 = scalar_lea.vmem [#allocation3], %s681
        // Predicated region
        $region87: #{tpu_custom_call.1} parent=81 // pred_check
          %p683 = pneg %p191
        $region88: #{tpu_custom_call.1} parent=81 // pred_check_branch
          %685 = sbr.rel (%p683) target = $region90
        $region89: #{tpu_custom_call.1} parent=81 // pred_region
          %s687 = ssub.s32 64, 64
          %688 = vsyncadd %s679, %s687
          %s689 = smul.addr %s21, 64
          %s690 = scalar_lea.hbm %s7, %s689
          %s692 = sshll.u32 %s682, 4
          %s693 = int_to_ptr.vmem [resolvable:$true] %s692
          %695 = dma.vmem_to_hbm [thread:$0]  %s693, 64, %s690, %s679
        $region90: #{tpu_custom_call.1} parent=81 // pred_fallthru
          _
      $region82: #{tpu_custom_call.1} parent=5 // pred_fallthru
        _
      %p696 = scmp.le.s32.totalorder 2, %s16
      // Predicated region
      $region91: #{tpu_custom_call.1} parent=5 // pred_check
        %p697 = pneg %p696
      $region92: #{tpu_custom_call.1} parent=5 // pred_check_branch
        %699 = sbr.rel (%p697) target = $region94
      $region93: #{tpu_custom_call.1} parent=5 // pred_region
        %s700 = ssub.s32 %s16, 2
        // Predicated region
        $region95: #{tpu_custom_call.1} parent=93 // pred_check
          %p701 = pneg %p197
        $region96: #{tpu_custom_call.1} parent=93 // pred_check_branch
          %703 = sbr.rel (%p701) target = $region98
        $region97: #{tpu_custom_call.1} parent=93 // pred_region
          %s704 = sand.u32 %s182, 1
          %s705 = scalar_lea.sflag [#allocation4], %s704
          %s706 = sand.u32 %s182, 1
          %s707 = smul.addr %s706, 4
          %s708 = scalar_lea.vmem [#allocation3], %s707
          %709 = dma.done %s705, 64
        $region98: #{tpu_custom_call.1} parent=93 // pred_fallthru
          _
      $region94: #{tpu_custom_call.1} parent=5 // pred_fallthru
        _
    $region6: #{tpu_custom_call.1} parent=1 // loop_footer
      %s20 = sadd.s32 1, %s16
    $region7: #{tpu_custom_call.1} parent=1 // loop_footer_branch
      %15 = sbr.rel target = $region3
    $region8: #{tpu_custom_call.1} parent=1 // loop_exit
      _
    %710 = vsyncpa [#allocation4], 1
    %s711 = scalar_lea.sflag [#allocation4], 1
    %712 = vsyncpa %s711, 1

</llo_original>
